<compile_context>
chip_gen: v6e
topology: v6e:2x2x1
jax: 0.10.0
libtpu: 0.0.40
codegen_flags: <defaults>
</compile_context>

<pallas_src>
import jax
import jax.numpy as jnp
from jax.experimental import pallas as pl
from jax.experimental.pallas import tpu as pltpu


def _round_up(v, m):
    return ((v + m - 1) // m) * m


def _vmem_capacity_bytes():
    """Best-effort per-core VMEM capacity; conservative fallback (v7x = 64 MiB)."""
    try:
        return int(pltpu.get_tpu_info().vmem_capacity_bytes)
    except Exception:
        pass
    try:
        kind = jax.devices()[0].device_kind.lower()
    except Exception:
        kind = ""
    if any(tag in kind for tag in ("v4", "v5", "v6")):
        return 128 << 20
    return 64 << 20


def _relnet_kernel(x_ref, w1_ref, b1_ref, w2_ref, b2_ref, o_ref):
    # x_ref : (TN, D_in)  input rows (f32 or bf16), streamed per grid step
    # w1_ref: (D_in, H)   fc1 weight (pre-transposed), resident in VMEM
    # b1_ref: (1, H)      fc1 bias (f32), resident
    # w2_ref: (8, H)      fc2 weight row, replicated over 8 sublanes, resident
    # b2_ref: (1,)        fc2 bias, SMEM scalar
    # o_ref : (1, TN)     lane-dense output probabilities (f32)
    h = jnp.dot(x_ref[...], w1_ref[...], preferred_element_type=jnp.float32)  # MXU, f32 acc
    h = jnp.maximum(h + b1_ref[...], 0.0)                                     # bias + ReLU (VPU, f32)
    # fc2 as a transposed matmul: contract H of (8,H) with H of (TN,H) -> (8,TN).
    # The result is already lane-dense along TN; only row 0 is meaningful.
    z = jax.lax.dot_general(w2_ref[...], h, (((1,), (1,)), ((), ())),
                            preferred_element_type=jnp.float32)
    o_ref[...] = jax.nn.sigmoid(z[0:1, :] + b2_ref[0]).astype(o_ref.dtype)    # EUP, f32 epilogue


def relation_network_coarse_2fc(x, w1, b1, w2, b2, *, max_tile_n=16384):
    """Fused forward pass of RelationNetworkCoarse2FC.

    Args:
      x:  (N, input_size)            f32 or bf16
      w1: (input_size, hidden_size)  transpose of torch fc1.weight (f32 or bf16)
      b1: (hidden_size,)             f32
      w2: (hidden_size, 1) / (1, hidden_size) / (hidden_size,)  fc2 weight
      b2: (1,)                       f32
    Returns:
      (N, 1) float32 = sigmoid(relu(x @ w1 + b1) @ w2 + b2)
    """
    n, d_in = x.shape
    hidden = w1.shape[1]
    w1 = w1.astype(x.dtype)                       # keep MXU operand dtypes matched
    x_isz = jnp.dtype(x.dtype).itemsize
    w_isz = jnp.dtype(w1.dtype).itemsize

    # --- generation-aware VMEM budget --------------------------------------
    cap = _vmem_capacity_bytes()                  # 128 MiB v4/v5e/v6e, 64 MiB v7x
    vmem_limit = min(int(cap * 0.8), 112 << 20)   # ~102 MiB v5e/v6e, ~51 MiB v7x

    lane = 128
    hidden_pad = _round_up(hidden, lane)
    d_in_lpad = _round_up(d_in, lane)
    sub_w = max(8, 32 // w_isz)                   # sublane quantum for w1's dtype

    # VMEM that does not scale with tile_n (pipeline double-buffers each spec).
    fixed_bytes = (2 * _round_up(d_in, sub_w) * hidden_pad * w_isz   # w1 buffers
                   + 2 * 8 * hidden_pad * 4                          # b1 buffers
                   + 2 * 8 * hidden_pad * 4)                         # w2 row buffers
    slack = 2 << 20
    # Per-row VMEM of the x tile: x double buffer (lane padded), f32 hidden
    # intermediate (h), and the lane-dense output double buffer (8 sublanes).
    per_row = 2 * d_in_lpad * x_isz + 2 * hidden_pad * 4 + 2 * 8 * 4

    budget_x = vmem_limit - fixed_bytes - slack
    if budget_x < per_row * lane:
        # TODO(synk): add a K/H-tiled fallback for fc1 layers too large to hold resident in VMEM.
        raise ValueError("fc1 parameters too large to keep resident in VMEM")

    tile_max = max(lane, min((budget_x // per_row) // lane * lane, max_tile_n))

    # --- grid / tile balance (small padded tail; grid >= 2 for v7x megacore) ---
    grid_n = max(1, pl.cdiv(n, tile_max))
    if grid_n == 1 and n > lane:
        grid_n = 2
    tile_n = _round_up(pl.cdiv(n, grid_n), lane)
    while tile_n > tile_max:                      # re-balance after rounding
        grid_n += 1
        tile_n = _round_up(pl.cdiv(n, grid_n), lane)
    n_pad = grid_n * tile_n

    if n_pad != n:
        x = jnp.pad(x, ((0, n_pad - n), (0, 0)))

    # --- parameter layout ----------------------------------------------------
    b1_2d = b1.reshape(1, hidden).astype(jnp.float32)
    w2_rep = jnp.broadcast_to(jnp.reshape(w2, (1, hidden)).astype(jnp.float32), (8, hidden))
    b2_1d = b2.reshape(1).astype(jnp.float32)     # SMEM scalar

    out = pl.pallas_call(
        _relnet_kernel,
        out_shape=jax.ShapeDtypeStruct((1, n_pad), jnp.float32),
        grid_spec=pltpu.PrefetchScalarGridSpec(
            num_scalar_prefetch=0,
            grid=(grid_n,),
            in_specs=[
                pl.BlockSpec((tile_n, d_in), lambda i: (i, 0)),      # x: streamed row tiles
                pl.BlockSpec((d_in, hidden), lambda i: (0, 0)),      # w1: resident
                pl.BlockSpec((1, hidden), lambda i: (0, 0)),         # b1: resident
                pl.BlockSpec((8, hidden), lambda i: (0, 0)),         # w2 row (replicated): resident
                pl.BlockSpec(memory_space=pltpu.MemorySpace.SMEM),   # b2: SMEM scalar
            ],
            out_specs=pl.BlockSpec((1, tile_n), lambda i: (0, i)),   # lane-dense output blocks
        ),
        compiler_params=pltpu.CompilerParams(
            dimension_semantics=("parallel",),   # shards grid across TCs on v7x
            vmem_limit_bytes=int(vmem_limit),
        ),
    )(x, w1, b1_2d, w2_rep, b2_1d)

    return out[0, :n].reshape(n, 1)


if __name__ == "__main__":
    # Small deterministic setup; N deliberately not a multiple of the tile size
    # so the ragged-N / multi-tile (grid=2) path is exercised.
    N, INPUT_SIZE, HIDDEN_SIZE = 200, 32, 32

    key = jax.random.PRNGKey(0)
    kx, kw1, kb1, kw2, kb2 = jax.random.split(key, 5)

    x = jax.random.normal(kx, (N, INPUT_SIZE), dtype=jnp.float32)
    w1 = jax.random.normal(kw1, (INPUT_SIZE, HIDDEN_SIZE), dtype=jnp.float32) * 0.1
    b1 = jax.random.normal(kb1, (HIDDEN_SIZE,), dtype=jnp.float32) * 0.1
    w2 = jax.random.normal(kw2, (HIDDEN_SIZE, 1), dtype=jnp.float32) * 0.1
    b2 = jax.random.normal(kb2, (1,), dtype=jnp.float32) * 0.1

    # f32 path.
    out = jax.block_until_ready(relation_network_coarse_2fc(x, w1, b1, w2, b2))
    ref = jax.nn.sigmoid(jnp.maximum(x @ w1 + b1, 0.0) @ w2 + b2)
    assert out.shape == (N, 1)
    assert jnp.allclose(out, ref, atol=1e-4, rtol=1e-4)

    # bf16-input path: halves HBM bytes of the dominant x stream; accumulation
    # and the epilogue stay in f32 inside the kernel.
    x_bf = x.astype(jnp.bfloat16)
    w1_bf = w1.astype(jnp.bfloat16)
    out_bf = jax.block_until_ready(relation_network_coarse_2fc(x_bf, w1_bf, b1, w2, b2))
    ref_bf = jax.nn.sigmoid(
        jnp.maximum(x_bf.astype(jnp.float32) @ w1_bf.astype(jnp.float32) + b1, 0.0) @ w2 + b2)
    assert out_bf.shape == (N, 1)
    assert jnp.allclose(out_bf, ref_bf, atol=2e-2, rtol=2e-2)

    print("KERNEL_OK")
</pallas_src>

<mosaic_0001>
module attributes {stable_mosaic.version = 11 : i64} {
  func.func @_relnet_kernel(%arg0: i32, %arg1: memref<128x32xf32, #tpu.memory_space<vmem>>, %arg2: memref<32x32xf32, #tpu.memory_space<vmem>>, %arg3: memref<1x32xf32, #tpu.memory_space<vmem>>, %arg4: memref<8x32xf32, #tpu.memory_space<vmem>>, %arg5: memref<1xf32, #tpu.memory_space<smem>>, %arg6: memref<1x128xf32, #tpu.memory_space<vmem>>) attributes {dimension_semantics = [#tpu.dimension_semantics<parallel>], iteration_bounds = array<i64: 2>, scalar_prefetch = 0 : i64, scratch_operands = 0 : i64, tpu.core_type = #tpu.core_type<tc>, window_params = [{transform_indices = @transform_0, window_bounds = array<i64: 128, 32>}, {pipeline_mode = #tpu.pipeline_mode<synchronous>, transform_indices = @transform_1, window_bounds = array<i64: 32, 32>}, {pipeline_mode = #tpu.pipeline_mode<synchronous>, transform_indices = @transform_2, window_bounds = array<i64: 1, 32>}, {pipeline_mode = #tpu.pipeline_mode<synchronous>, transform_indices = @transform_3, window_bounds = array<i64: 8, 32>}, {transform_indices = @transform_4, window_bounds = array<i64: 1>}, {transform_indices = @transform_5, window_bounds = array<i64: 1, 128>}]} {
    %c0 = arith.constant 0 : index
    %c0_0 = arith.constant 0 : index
    %0 = vector.load %arg1[%c0, %c0_0] : memref<128x32xf32, #tpu.memory_space<vmem>>, vector<128x32xf32>
    %c0_1 = arith.constant 0 : index
    %c0_2 = arith.constant 0 : index
    %1 = vector.load %arg2[%c0_1, %c0_2] : memref<32x32xf32, #tpu.memory_space<vmem>>, vector<32x32xf32>
    %cst = arith.constant dense<0.000000e+00> : vector<128x32xf32>
    %2 = tpu.matmul %0, %1, %cst {dimension_numbers = #tpu.dot_dimension_numbers<[1], [0], [0], [1], [0, 0, 1, 1], [], []>} : vector<128x32xf32>, vector<32x32xf32>, vector<128x32xf32> -> vector<128x32xf32>
    %c0_3 = arith.constant 0 : index
    %c0_4 = arith.constant 0 : index
    %3 = vector.load %arg3[%c0_3, %c0_4] : memref<1x32xf32, #tpu.memory_space<vmem>>, vector<1x32xf32>
    %4 = vector.broadcast %3 : vector<1x32xf32> to vector<128x32xf32>
    %5 = arith.addf %2, %4 : vector<128x32xf32>
    %cst_5 = arith.constant 0.000000e+00 : f32
    %6 = vector.broadcast %cst_5 : f32 to vector<128x32xf32>
    %7 = arith.maximumf %5, %6 : vector<128x32xf32>
    %c0_6 = arith.constant 0 : index
    %c0_7 = arith.constant 0 : index
    %8 = vector.load %arg4[%c0_6, %c0_7] : memref<8x32xf32, #tpu.memory_space<vmem>>, vector<8x32xf32>
    %cst_8 = arith.constant dense<0.000000e+00> : vector<8x128xf32>
    %9 = tpu.matmul %8, %7, %cst_8 {dimension_numbers = #tpu.dot_dimension_numbers<[1], [1], [0], [0], [0, 0, 1, 0], [], []>} : vector<8x32xf32>, vector<128x32xf32>, vector<8x128xf32> -> vector<8x128xf32>
    %10 = vector.extract_strided_slice %9 {offsets = [0, 0], sizes = [1, 128], strides = [1, 1]} : vector<8x128xf32> to vector<1x128xf32>
    %c0_9 = arith.constant 0 : index
    %11 = memref.load %arg5[%c0_9] : memref<1xf32, #tpu.memory_space<smem>>
    %12 = vector.broadcast %11 : f32 to vector<1x128xf32>
    %13 = arith.addf %10, %12 : vector<1x128xf32>
    %14 = arith.negf %13 : vector<1x128xf32>
    %15 = math.exp %14 : vector<1x128xf32>
    %cst_10 = arith.constant 1.000000e+00 : f32
    %16 = vector.broadcast %cst_10 : f32 to vector<1x128xf32>
    %17 = arith.addf %16, %15 : vector<1x128xf32>
    %18 = arith.divf %16, %17 : vector<1x128xf32>
    %c0_11 = arith.constant 0 : index
    %c0_12 = arith.constant 0 : index
    %19 = vector.load %arg6[%c0_11, %c0_12] : memref<1x128xf32, #tpu.memory_space<vmem>>, vector<1x128xf32>
    tpu.vector_store %arg6[%c0_11, %c0_12], %18 {strides = array<i32>} : memref<1x128xf32, #tpu.memory_space<vmem>>, vector<1x128xf32>,
    return
  }
  func.func @transform_0(%arg0: i32) -> (i32, i32) {
    %c0_i32 = arith.constant 0 : i32
    %c0_i32_0 = arith.constant 0 : i32
    return %arg0, %c0_i32 : i32, i32
  }
  func.func @transform_1(%arg0: i32) -> (i32, i32) {
    %c0_i32 = arith.constant 0 : i32
    %c0_i32_0 = arith.constant 0 : i32
    %c0_i32_1 = arith.constant 0 : i32
    return %c0_i32, %c0_i32_0 : i32, i32
  }
  func.func @transform_2(%arg0: i32) -> (i32, i32) {
    %c0_i32 = arith.constant 0 : i32
    %c0_i32_0 = arith.constant 0 : i32
    %c0_i32_1 = arith.constant 0 : i32
    return %c0_i32, %c0_i32_0 : i32, i32
  }
  func.func @transform_3(%arg0: i32) -> (i32, i32) {
    %c0_i32 = arith.constant 0 : i32
    %c0_i32_0 = arith.constant 0 : i32
    %c0_i32_1 = arith.constant 0 : i32
    return %c0_i32, %c0_i32_0 : i32, i32
  }
  func.func @transform_4(%arg0: i32) -> i32 {
    %c0_i32 = arith.constant 0 : i32
    %c0_i32_0 = arith.constant 0 : i32
    return %c0_i32 : i32
  }
  func.func @transform_5(%arg0: i32) -> (i32, i32) {
    %c0_i32 = arith.constant 0 : i32
    %c0_i32_0 = arith.constant 0 : i32
    return %c0_i32, %arg0 : i32, i32
  }
}

</mosaic_0001>

<llo_original>
// kernel: tpu_custom_call.1
$region0: #{tpu_custom_call.1}
  #allocation0 [shape = 'u32[]', space=smem, size = 0x4, offset = 0x4, fixed_abs, tag = 'smem constant byte address 0x4 - core index']
  #allocation1 [shape = 'u32[144,128]{1,0:T(1,128)}', space=vmem, size = 0x12000, scoped, tag = 'internal scratch']
  #allocation2 [shape = 'f32[1]{0:T(128)S(6)}', space=smem, size = 0x200, scoped, tag = 'scoped memory for tpu_custom_call.1']
  %s0 = inlined_call_operand.vmem [shape: f32[256,32], index: 0, kind: input, shape index: {}]
  %s1 = inlined_call_operand.vmem [shape: f32[32,32], index: 1, kind: input, shape index: {}]
  %s2 = inlined_call_operand.vmem [shape: f32[1,32], index: 2, kind: input, shape index: {}]
  %s3 = inlined_call_operand.vmem [shape: f32[8,32], index: 3, kind: input, shape index: {}]
  %s4 = inlined_call_operand.<no memory space> [shape: f32[1], index: 4, kind: input, shape index: {}]
  %s5 = inlined_call_operand.hbm [shape: f32[1,256], index: 5, kind: output, shape index: {}]
  %s6 = sld [smem:[#allocation0]]
  $region53: #{tpu_custom_call.1} parent=0
    _
  %s8 = ssub.s32 1, %s6
  %s9 = scalar_select 0, %s8, %s6
  %10 = sst [smem:[#allocation2]] %s4
  $region1: #{tpu_custom_call.1} parent=0
    #allocation3 [shape = 'u8[1024]{0}', space=vmem, size = 0x400, scoped, tag = 'output window, operand 0']
    #allocation4 [shape = 's32[2]{0}', space=sflag, size = 0x8, scoped, tag = 'scoped memory for tpu_custom_call.1']
    %11 = vsyncpa [#allocation4], 0
    %s12 = scalar_lea.sflag [#allocation4], 1
    %13 = vsyncpa %s12, 0
    loop: start=0, step=1, limit=4
    $region2: #{tpu_custom_call.1} parent=1 // loop_pre_header
      _
    $region3: #{tpu_custom_call.1} parent=1 // loop_header
      %s15 = sphi 0, %s19
      %p16 = scmp.ge.s32.totalorder %s15, 4
      %s25 = sphi 0, %s27
      %s28 = sphi 0, %s25
      %s29 = sphi 0, %s28
      %s45 = sphi 0, %s29
      %s49 = sphi 0, %s49
      %s51 = sphi 0, %s49
      %s52 = sphi 0, %s51
      %s66 = sphi 0, %s52
      %s70 = sphi 0, %s70
      %s72 = sphi 0, %s70
      %s73 = sphi 0, %s72
      %s87 = sphi 0, %s73
      %s91 = sphi 0, %s91
      %s93 = sphi 0, %s91
      %s94 = sphi 0, %s93
      %s108 = sphi 0, %s94
      %s112 = sphi 0, %s112
      %s114 = sphi 0, %s112
      %s115 = sphi 0, %s114
      %s129 = sphi 0, %s115
      %s135 = sphi 0, %s137
      %s138 = sphi 0, %s135
      %s139 = sphi 0, %s138
      %s155 = sphi 0, %s139
    $region4: #{tpu_custom_call.1} parent=1 // loop_header_branch
      %18 = sbr.rel (%p16) target = $region8
    $region5: #{tpu_custom_call.1} parent=1 // loop_body
      %s20 = ssub.s32 %s15, 1
      %s21 = ssub.s32 %s15, 2
      %s22 = sadd.s32 %s15, 1
      %s23 = ssub.s32 %s15, %s22
      %p24 = scmp.eq.s32.totalorder %s23, 0
      %s26 = sadd.s32 %s25, 1
      %s27 = scalar_select %p24, %s25, %s26
      %p30 = pneg %p24
      %p31 = scmp.eq.s32.totalorder %s15, 1
      %p32 = por %p30, %p31
      %p33 = scmp.ne.s32.totalorder %s25, %s28
      %p34 = scmp.eq.s32.totalorder %s15, 0
      %p35 = por %p33, %p34
      %p36 = scmp.ne.s32.totalorder %s25, %s28
      %p37 = scmp.eq.s32.totalorder %s20, 1
      %p38 = por %p36, %p37
      %p39 = scmp.ne.s32.totalorder %s28, %s29
      %p40 = scmp.eq.s32.totalorder %s20, 0
      %p41 = por %p39, %p40
      %p42 = scmp.ne.s32.totalorder %s28, %s29
      %p43 = scmp.eq.s32.totalorder %s21, 1
      %p44 = por %p42, %p43
      %p46 = scmp.ne.s32.totalorder %s29, %s45
      %p47 = scmp.eq.s32.totalorder %s21, 0
      %p48 = por %p46, %p47
      %s50 = sadd.s32 %s49, 1
      %p53 = scmp.eq.s32.totalorder %s15, 1
      %p54 = scmp.ne.s32.totalorder %s49, %s51
      %p55 = scmp.eq.s32.totalorder %s15, 0
      %p56 = por %p54, %p55
      %p57 = scmp.ne.s32.totalorder %s49, %s51
      %p58 = scmp.eq.s32.totalorder %s20, 1
      %p59 = por %p57, %p58
      %p60 = scmp.ne.s32.totalorder %s51, %s52
      %p61 = scmp.eq.s32.totalorder %s20, 0
      %p62 = por %p60, %p61
      %p63 = scmp.ne.s32.totalorder %s51, %s52
      %p64 = scmp.eq.s32.totalorder %s21, 1
      %p65 = por %p63, %p64
      %p67 = scmp.ne.s32.totalorder %s52, %s66
      %p68 = scmp.eq.s32.totalorder %s21, 0
      %p69 = por %p67, %p68
      %s71 = sadd.s32 %s70, 1
      %p74 = scmp.eq.s32.totalorder %s15, 1
      %p75 = scmp.ne.s32.totalorder %s70, %s72
      %p76 = scmp.eq.s32.totalorder %s15, 0
      %p77 = por %p75, %p76
      %p78 = scmp.ne.s32.totalorder %s70, %s72
      %p79 = scmp.eq.s32.totalorder %s20, 1
      %p80 = por %p78, %p79
      %p81 = scmp.ne.s32.totalorder %s72, %s73
      %p82 = scmp.eq.s32.totalorder %s20, 0
      %p83 = por %p81, %p82
      %p84 = scmp.ne.s32.totalorder %s72, %s73
      %p85 = scmp.eq.s32.totalorder %s21, 1
      %p86 = por %p84, %p85
      %p88 = scmp.ne.s32.totalorder %s73, %s87
      %p89 = scmp.eq.s32.totalorder %s21, 0
      %p90 = por %p88, %p89
      %s92 = sadd.s32 %s91, 1
      %p95 = scmp.eq.s32.totalorder %s15, 1
      %p96 = scmp.ne.s32.totalorder %s91, %s93
      %p97 = scmp.eq.s32.totalorder %s15, 0
      %p98 = por %p96, %p97
      %p99 = scmp.ne.s32.totalorder %s91, %s93
      %p100 = scmp.eq.s32.totalorder %s20, 1
      %p101 = por %p99, %p100
      %p102 = scmp.ne.s32.totalorder %s93, %s94
      %p103 = scmp.eq.s32.totalorder %s20, 0
      %p104 = por %p102, %p103
      %p105 = scmp.ne.s32.totalorder %s93, %s94
      %p106 = scmp.eq.s32.totalorder %s21, 1
      %p107 = por %p105, %p106
      %p109 = scmp.ne.s32.totalorder %s94, %s108
      %p110 = scmp.eq.s32.totalorder %s21, 0
      %p111 = por %p109, %p110
      %s113 = sadd.s32 %s112, 1
      %p116 = scmp.eq.s32.totalorder %s15, 1
      %p117 = scmp.ne.s32.totalorder %s112, %s114
      %p118 = scmp.eq.s32.totalorder %s15, 0
      %p119 = por %p117, %p118
      %p120 = scmp.ne.s32.totalorder %s112, %s114
      %p121 = scmp.eq.s32.totalorder %s20, 1
      %p122 = por %p120, %p121
      %p123 = scmp.ne.s32.totalorder %s114, %s115
      %p124 = scmp.eq.s32.totalorder %s20, 0
      %p125 = por %p123, %p124
      %p126 = scmp.ne.s32.totalorder %s114, %s115
      %p127 = scmp.eq.s32.totalorder %s21, 1
      %p128 = por %p126, %p127
      %p130 = scmp.ne.s32.totalorder %s115, %s129
      %p131 = scmp.eq.s32.totalorder %s21, 0
      %p132 = por %p130, %p131
      %s133 = ssub.s32 %s15, %s22
      %p134 = scmp.eq.s32.totalorder %s133, 0
      %s136 = sadd.s32 %s135, 1
      %s137 = scalar_select %p134, %s135, %s136
      %p140 = pneg %p134
      %p141 = scmp.eq.s32.totalorder %s15, 1
      %p142 = por %p140, %p141
      %p143 = scmp.ne.s32.totalorder %s135, %s138
      %p144 = scmp.eq.s32.totalorder %s15, 0
      %p145 = por %p143, %p144
      %p146 = scmp.ne.s32.totalorder %s135, %s138
      %p147 = scmp.eq.s32.totalorder %s20, 1
      %p148 = por %p146, %p147
      %p149 = scmp.ne.s32.totalorder %s138, %s139
      %p150 = scmp.eq.s32.totalorder %s20, 0
      %p151 = por %p149, %p150
      %p152 = scmp.ne.s32.totalorder %s138, %s139
      %p153 = scmp.eq.s32.totalorder %s21, 1
      %p154 = por %p152, %p153
      %p156 = scmp.ne.s32.totalorder %s139, %s155
      %p157 = scmp.eq.s32.totalorder %s21, 0
      %p158 = por %p156, %p157
      %p159 = scmp.le.s32.totalorder 1, %s15
      %p160 = scmp.lt.s32.totalorder %s15, 3
      %p161 = pnand %p159, %p160
      %p162 = pneg %p161
      // Predicated region
      $region9: #{tpu_custom_call.1} parent=5 // pred_check
        _
      $region10: #{tpu_custom_call.1} parent=5 // pred_check_branch
        %164 = sbr.rel (%p161) target = $region12
      $region11: #{tpu_custom_call.1} parent=5 // pred_region
        %s165 = ssub.s32 %s15, 1
        // Predicated region
        $region13: #{tpu_custom_call.1} parent=11 // pred_check
          %p166 = pneg %p62
        $region14: #{tpu_custom_call.1} parent=11 // pred_check_branch
          %168 = sbr.rel (%p166) target = $region16
        $region15: #{tpu_custom_call.1} parent=11 // pred_region
          _
        $region16: #{tpu_custom_call.1} parent=11 // pred_fallthru
          _
        // Predicated region
        $region17: #{tpu_custom_call.1} parent=11 // pred_check
          %p169 = pneg %p83
        $region18: #{tpu_custom_call.1} parent=11 // pred_check_branch
          %171 = sbr.rel (%p169) target = $region20
        $region19: #{tpu_custom_call.1} parent=11 // pred_region
          _
        $region20: #{tpu_custom_call.1} parent=11 // pred_fallthru
          _
        // Predicated region
        $region21: #{tpu_custom_call.1} parent=11 // pred_check
          %p172 = pneg %p104
        $region22: #{tpu_custom_call.1} parent=11 // pred_check_branch
          %174 = sbr.rel (%p172) target = $region24
        $region23: #{tpu_custom_call.1} parent=11 // pred_region
          _
        $region24: #{tpu_custom_call.1} parent=11 // pred_fallthru
          _
        // Predicated region
        $region25: #{tpu_custom_call.1} parent=11 // pred_check
          %p175 = pneg %p125
        $region26: #{tpu_custom_call.1} parent=11 // pred_check_branch
          %177 = sbr.rel (%p175) target = $region28
        $region27: #{tpu_custom_call.1} parent=11 // pred_region
          _
        $region28: #{tpu_custom_call.1} parent=11 // pred_fallthru
          _
      $region12: #{tpu_custom_call.1} parent=5 // pred_fallthru
        _
      %p178 = scmp.lt.s32.totalorder %s15, 2
      // Predicated region
      $region29: #{tpu_custom_call.1} parent=5 // pred_check
        %p179 = pneg %p178
      $region30: #{tpu_custom_call.1} parent=5 // pred_check_branch
        %181 = sbr.rel (%p179) target = $region32
      $region31: #{tpu_custom_call.1} parent=5 // pred_region
        // Predicated region
        $region33: #{tpu_custom_call.1} parent=31 // pred_check
          %p182 = pneg %p35
        $region34: #{tpu_custom_call.1} parent=31 // pred_check_branch
          %184 = sbr.rel (%p182) target = $region36
        $region35: #{tpu_custom_call.1} parent=31 // pred_region
          %s185 = smul.u32 16, %s15
          %p186 = scmp.lt.s32.totalorder %s185, 31
          %s187 = scalar_select %p186, %s185, 31
          %s188 = smul.addr %s187, 8
          %s189 = scalar_lea.vmem %s0, %s188
          %s190 = smul.u32 16, %s15
        $region36: #{tpu_custom_call.1} parent=31 // pred_fallthru
          _
      $region32: #{tpu_custom_call.1} parent=5 // pred_fallthru
        _
      %p191 = scmp.le.s32.totalorder 1, %s15
      %p192 = scmp.lt.s32.totalorder %s15, 3
      %p193 = pnand %p191, %p192
      %p194 = pneg %p193
      // Predicated region
      $region37: #{tpu_custom_call.1} parent=5 // pred_check
        _
      $region38: #{tpu_custom_call.1} parent=5 // pred_check_branch
        %196 = sbr.rel (%p193) target = $region40
      $region39: #{tpu_custom_call.1} parent=5 // pred_region
        %s197 = ssub.s32 %s15, 1
        %s198 = smul.u32 16, %s20
        %p199 = scmp.lt.s32.totalorder %s198, 31
        %s200 = scalar_select %p199, %s198, 31
        %s201 = smul.addr %s200, 8
        %s202 = scalar_lea.vmem %s0, %s201
        %p203 = pneg %p41
        %p204 = pneg %p38
        %p205 = pneg %p62
        %p206 = pneg %p59
        %p207 = pneg %p83
        %p208 = pneg %p80
        %p209 = pneg %p104
        %p210 = pneg %p101
        %p211 = pneg %p125
        %p212 = pneg %p122
        %p213 = pneg %p151
        %p214 = pneg %p148
        %s215 = sand.u32 %s138, 1
        %s216 = scalar_lea.sflag [#allocation4], %s215
        %s217 = sand.u32 %s138, 1
        %s218 = scalar_lea.vmem [#allocation3], %s217
        %s219 = smul.u32 16, %s20
        %p220 = scmp.lt.s32.totalorder %s219, 31
        %s221 = scalar_select %p220, %s219, 31
        %s222 = smul.addr %s221, 8
        %s223 = scalar_lea.vmem %s0, %s222
        %s224 = smul.u32 16, %s20
        %v225 = vld [vmem:[%s223] sm:$0xff]
        %v226 = vld [vmem:[%s223 + $0x8] sm:$0xff]
        %v227 = vld [vmem:[%s223 + $0x10] sm:$0xff]
        %v228 = vld [vmem:[%s223 + $0x18] sm:$0xff]
        %v229 = vld [vmem:[%s223 + $0x20] sm:$0xff]
        %v230 = vld [vmem:[%s223 + $0x28] sm:$0xff]
        %v231 = vld [vmem:[%s223 + $0x30] sm:$0xff]
        %v232 = vld [vmem:[%s223 + $0x38] sm:$0xff]
        %v233 = vld [vmem:[%s223 + $0x40] sm:$0xff]
        %v234 = vld [vmem:[%s223 + $0x48] sm:$0xff]
        %v235 = vld [vmem:[%s223 + $0x50] sm:$0xff]
        %v236 = vld [vmem:[%s223 + $0x58] sm:$0xff]
        %v237 = vld [vmem:[%s223 + $0x60] sm:$0xff]
        %v238 = vld [vmem:[%s223 + $0x68] sm:$0xff]
        %v239 = vld [vmem:[%s223 + $0x70] sm:$0xff]
        %v240 = vld [vmem:[%s223 + $0x78] sm:$0xff]
        %v241 = vld [vmem:[%s1] sm:$0xff]
        %v242 = vld [vmem:[%s1 + $0x8] sm:$0xff]
        %v243 = vld [vmem:[%s1 + $0x10] sm:$0xff]
        %v244 = vld [vmem:[%s1 + $0x18] sm:$0xff]
        %v245 = vld [vmem:[%s2] sm:$0x1]
        %v247 = vlaneseq
        %v248 = vshrl.u32 %v247, 7
        %v249 = vsub.s32 0, %v248
        %v250 = vrot.slane %v245, %v249
        %vm252 = vcmask 261120
        %v254 = vsel %vm252, %v225, 0
        %v257 = vsel %vm252, %v226, 0
        %v260 = vsel %vm252, %v227, 0
        %v263 = vsel %vm252, %v228, 0
        %v266 = vsel %vm252, %v229, 0
        %v269 = vsel %vm252, %v230, 0
        %v272 = vsel %vm252, %v231, 0
        %v275 = vsel %vm252, %v232, 0
        %v278 = vsel %vm252, %v233, 0
        %v281 = vsel %vm252, %v234, 0
        %v284 = vsel %vm252, %v235, 0
        %v287 = vsel %vm252, %v236, 0
        %v290 = vsel %vm252, %v237, 0
        %v293 = vsel %vm252, %v238, 0
        %v296 = vsel %vm252, %v239, 0
        %v299 = vsel %vm252, %v240, 0
        %301 = vmatprep.subr.mxu0 0.0
        %302 = vmatpush1.msra.mxu0 0.0
        %303 = vmatprep.subr.mxu0 0.0
        %304 = vmatpush1.msra.mxu0 0.0
        %305 = vmatprep.subr.mxu0 0.0
        %306 = vmatpush1.msra.mxu0 0.0
        %307 = vmatprep.subr.mxu0 0.0
        %308 = vmatpush1.msra.mxu0 0.0
        %309 = vmatprep.subr.mxu0 0.0
        %310 = vmatpush1.msra.mxu0 0.0
        %311 = vmatprep.subr.mxu0 0.0
        %312 = vmatpush1.msra.mxu0 0.0
        %313 = vmatprep.subr.mxu0 0.0
        %314 = vmatpush1.msra.mxu0 0.0
        %315 = vmatprep.subr.mxu0 0.0
        %316 = vmatpush1.msra.mxu0 0.0
        %317 = vmatprep.subr.mxu0 0.0
        %318 = vmatpush1.msra.mxu0 0.0
        %319 = vmatprep.subr.mxu0 0.0
        %320 = vmatpush1.msra.mxu0 0.0
        %321 = vmatprep.subr.mxu0 0.0
        %322 = vmatpush1.msra.mxu0 0.0
        %323 = vmatprep.subr.mxu0 0.0
        %324 = vmatpush1.msra.mxu0 0.0
        %325 = vmatprep.subr.mxu0 0.0
        %326 = vmatpush1.msra.mxu0 %v244
        %327 = vmatprep.subr.mxu0 0.0
        %328 = vmatpush1.msra.mxu0 %v243
        %329 = vmatprep.subr.mxu0 0.0
        %330 = vmatpush1.msra.mxu0 %v242
        %331 = vmatprep.subr.mxu0 0.0
        %332 = vmatpush1.msra.mxu0 %v241
        %333 = vmatprep.subr.mxu0 0.0
        %334 = vmatpush2.msra.mxu0 0.0
        %335 = vmatprep.subr.mxu0 0.0
        %336 = vmatpush2.msra.mxu0 0.0
        %337 = vmatprep.subr.mxu0 0.0
        %338 = vmatpush2.msra.mxu0 0.0
        %339 = vmatprep.subr.mxu0 0.0
        %340 = vmatpush2.msra.mxu0 0.0
        %341 = vmatprep.subr.mxu0 0.0
        %342 = vmatpush2.msra.mxu0 0.0
        %343 = vmatprep.subr.mxu0 0.0
        %344 = vmatpush2.msra.mxu0 0.0
        %345 = vmatprep.subr.mxu0 0.0
        %346 = vmatpush2.msra.mxu0 0.0
        %347 = vmatprep.subr.mxu0 0.0
        %348 = vmatpush2.msra.mxu0 0.0
        %349 = vmatprep.subr.mxu0 0.0
        %350 = vmatpush2.msra.mxu0 0.0
        %351 = vmatprep.subr.mxu0 0.0
        %352 = vmatpush2.msra.mxu0 0.0
        %353 = vmatprep.subr.mxu0 0.0
        %354 = vmatpush2.msra.mxu0 0.0
        %355 = vmatprep.subr.mxu0 0.0
        %356 = vmatpush2.msra.mxu0 0.0
        %357 = vmatprep.subr.mxu0 0.0
        %358 = vmatpush2.msra.mxu0 0.0
        %359 = vmatprep.subr.mxu0 0.0
        %360 = vmatpush2.msra.mxu0 0.0
        %361 = vmatprep.subr.mxu0 0.0
        %362 = vmatpush2.msra.mxu0 0.0
        %363 = vmatprep.subr.mxu0 0.0
        %364 = vmatpush2.msra.mxu0 0.0
        %365 = vmatprep.mubr.f32.mxu0 0.0
        %366 = vmatmul.mubr.f32.gmra.mxu0 %v254
        %v367 = vpop.f32.mrf.mxu0
        %v368 = vadd.f32 %v250, %v367
        %v369 = vpop.f32.mrf.mxu0
        %370 = vmatprep.mubr.f32.mxu0 0.0
        %371 = vmatmul.mubr.f32.gmra.mxu0 %v257
        %v372 = vpop.f32.mrf.mxu0
        %v373 = vadd.f32 %v250, %v372
        %v374 = vpop.f32.mrf.mxu0
        %375 = vmatprep.mubr.f32.mxu0 0.0
        %376 = vmatmul.mubr.f32.gmra.mxu0 %v260
        %v377 = vpop.f32.mrf.mxu0
        %v378 = vadd.f32 %v250, %v377
        %v379 = vpop.f32.mrf.mxu0
        %380 = vmatprep.mubr.f32.mxu0 0.0
        %381 = vmatmul.mubr.f32.gmra.mxu0 %v263
        %v382 = vpop.f32.mrf.mxu0
        %v383 = vadd.f32 %v250, %v382
        %v384 = vpop.f32.mrf.mxu0
        %385 = vmatprep.mubr.f32.mxu0 0.0
        %386 = vmatmul.mubr.f32.gmra.mxu0 %v266
        %v387 = vpop.f32.mrf.mxu0
        %v388 = vadd.f32 %v250, %v387
        %v389 = vpop.f32.mrf.mxu0
        %390 = vmatprep.mubr.f32.mxu0 0.0
        %391 = vmatmul.mubr.f32.gmra.mxu0 %v269
        %v392 = vpop.f32.mrf.mxu0
        %v393 = vadd.f32 %v250, %v392
        %v394 = vpop.f32.mrf.mxu0
        %395 = vmatprep.mubr.f32.mxu0 0.0
        %396 = vmatmul.mubr.f32.gmra.mxu0 %v272
        %v397 = vpop.f32.mrf.mxu0
        %v398 = vadd.f32 %v250, %v397
        %v399 = vpop.f32.mrf.mxu0
        %400 = vmatprep.mubr.f32.mxu0 0.0
        %401 = vmatmul.mubr.f32.gmra.mxu0 %v275
        %v402 = vpop.f32.mrf.mxu0
        %v403 = vadd.f32 %v250, %v402
        %v404 = vpop.f32.mrf.mxu0
        %405 = vmatprep.mubr.f32.mxu0 0.0
        %406 = vmatmul.mubr.f32.gmra.mxu0 %v278
        %v407 = vpop.f32.mrf.mxu0
        %v408 = vadd.f32 %v250, %v407
        %v409 = vpop.f32.mrf.mxu0
        %410 = vmatprep.mubr.f32.mxu0 0.0
        %411 = vmatmul.mubr.f32.gmra.mxu0 %v281
        %v412 = vpop.f32.mrf.mxu0
        %v413 = vadd.f32 %v250, %v412
        %v414 = vpop.f32.mrf.mxu0
        %415 = vmatprep.mubr.f32.mxu0 0.0
        %416 = vmatmul.mubr.f32.gmra.mxu0 %v284
        %v417 = vpop.f32.mrf.mxu0
        %v418 = vadd.f32 %v250, %v417
        %v419 = vpop.f32.mrf.mxu0
        %420 = vmatprep.mubr.f32.mxu0 0.0
        %421 = vmatmul.mubr.f32.gmra.mxu0 %v287
        %v422 = vpop.f32.mrf.mxu0
        %v423 = vadd.f32 %v250, %v422
        %v424 = vpop.f32.mrf.mxu0
        %425 = vmatprep.mubr.f32.mxu0 0.0
        %426 = vmatmul.mubr.f32.gmra.mxu0 %v290
        %v427 = vpop.f32.mrf.mxu0
        %v428 = vadd.f32 %v250, %v427
        %v429 = vpop.f32.mrf.mxu0
        %430 = vmatprep.mubr.f32.mxu0 0.0
        %431 = vmatmul.mubr.f32.gmra.mxu0 %v293
        %v432 = vpop.f32.mrf.mxu0
        %v433 = vadd.f32 %v250, %v432
        %v434 = vpop.f32.mrf.mxu0
        %435 = vmatprep.mubr.f32.mxu0 0.0
        %436 = vmatmul.mubr.f32.gmra.mxu0 %v296
        %v437 = vpop.f32.mrf.mxu0
        %v438 = vadd.f32 %v250, %v437
        %v439 = vpop.f32.mrf.mxu0
        %440 = vmatprep.mubr.f32.mxu0 0.0
        %441 = vmatmul.mubr.f32.gmra.mxu0 %v299
        %v442 = vpop.f32.mrf.mxu0
        %v443 = vadd.f32 %v250, %v442
        %v444 = vpop.f32.mrf.mxu0
        %445 = vdwg.mxu0
        %v446 = vmax.f32 %v368, 0.0
        %v447 = vmax.f32 %v373, 0.0
        %v448 = vmax.f32 %v378, 0.0
        %v449 = vmax.f32 %v383, 0.0
        %v450 = vmax.f32 %v388, 0.0
        %v451 = vmax.f32 %v393, 0.0
        %v452 = vmax.f32 %v398, 0.0
        %v453 = vmax.f32 %v403, 0.0
        %v454 = vmax.f32 %v408, 0.0
        %v455 = vmax.f32 %v413, 0.0
        %v456 = vmax.f32 %v418, 0.0
        %v457 = vmax.f32 %v423, 0.0
        %v458 = vmax.f32 %v428, 0.0
        %v459 = vmax.f32 %v433, 0.0
        %v460 = vmax.f32 %v438, 0.0
        %v461 = vmax.f32 %v443, 0.0
        %v462 = vld [vmem:[%s3] sm:$0xff]
        %v464 = vsel %vm252, %v462, 0
        %v467 = vsel %vm252, %v446, 0
        %v470 = vsel %vm252, %v447, 0
        %v473 = vsel %vm252, %v448, 0
        %v476 = vsel %vm252, %v449, 0
        %v479 = vsel %vm252, %v450, 0
        %v482 = vsel %vm252, %v451, 0
        %v485 = vsel %vm252, %v452, 0
        %v488 = vsel %vm252, %v453, 0
        %v491 = vsel %vm252, %v454, 0
        %v494 = vsel %vm252, %v455, 0
        %v497 = vsel %vm252, %v456, 0
        %v500 = vsel %vm252, %v457, 0
        %v503 = vsel %vm252, %v458, 0
        %v506 = vsel %vm252, %v459, 0
        %v509 = vsel %vm252, %v460, 0
        %v512 = vsel %vm252, %v461, 0
        %514 = vmatprep.subr.mxu0 0.0
        %515 = vmatpush1.xpose.msra.mxu0 %v512
        %516 = vmatprep.subr.mxu0 0.0
        %517 = vmatpush1.xpose.msra.mxu0 %v509
        %518 = vmatprep.subr.mxu0 0.0
        %519 = vmatpush1.xpose.msra.mxu0 %v506
        %520 = vmatprep.subr.mxu0 0.0
        %521 = vmatpush1.xpose.msra.mxu0 %v503
        %522 = vmatprep.subr.mxu0 0.0
        %523 = vmatpush1.xpose.msra.mxu0 %v500
        %524 = vmatprep.subr.mxu0 0.0
        %525 = vmatpush1.xpose.msra.mxu0 %v497
        %526 = vmatprep.subr.mxu0 0.0
        %527 = vmatpush1.xpose.msra.mxu0 %v494
        %528 = vmatprep.subr.mxu0 0.0
        %529 = vmatpush1.xpose.msra.mxu0 %v491
        %530 = vmatprep.subr.mxu0 0.0
        %531 = vmatpush1.xpose.msra.mxu0 %v488
        %532 = vmatprep.subr.mxu0 0.0
        %533 = vmatpush1.xpose.msra.mxu0 %v485
        %534 = vmatprep.subr.mxu0 0.0
        %535 = vmatpush1.xpose.msra.mxu0 %v482
        %536 = vmatprep.subr.mxu0 0.0
        %537 = vmatpush1.xpose.msra.mxu0 %v479
        %538 = vmatprep.subr.mxu0 0.0
        %539 = vmatpush1.xpose.msra.mxu0 %v476
        %540 = vmatprep.subr.mxu0 0.0
        %541 = vmatpush1.xpose.msra.mxu0 %v473
        %542 = vmatprep.subr.mxu0 0.0
        %543 = vmatpush1.xpose.msra.mxu0 %v470
        %544 = vmatprep.subr.mxu0 0.0
        %545 = vmatpush1.xpose.msra.mxu0 %v467
        %546 = vmatprep.subr.mxu0 0.0
        %547 = vmatpush2.xpose.msra.mxu0 0.0
        %548 = vmatprep.subr.mxu0 0.0
        %549 = vmatpush2.xpose.msra.mxu0 0.0
        %550 = vmatprep.subr.mxu0 0.0
        %551 = vmatpush2.xpose.msra.mxu0 0.0
        %552 = vmatprep.subr.mxu0 0.0
        %553 = vmatpush2.xpose.msra.mxu0 0.0
        %554 = vmatprep.subr.mxu0 0.0
        %555 = vmatpush2.xpose.msra.mxu0 0.0
        %556 = vmatprep.subr.mxu0 0.0
        %557 = vmatpush2.xpose.msra.mxu0 0.0
        %558 = vmatprep.subr.mxu0 0.0
        %559 = vmatpush2.xpose.msra.mxu0 0.0
        %560 = vmatprep.subr.mxu0 0.0
        %561 = vmatpush2.xpose.msra.mxu0 0.0
        %562 = vmatprep.subr.mxu0 0.0
        %563 = vmatpush2.xpose.msra.mxu0 0.0
        %564 = vmatprep.subr.mxu0 0.0
        %565 = vmatpush2.xpose.msra.mxu0 0.0
        %566 = vmatprep.subr.mxu0 0.0
        %567 = vmatpush2.xpose.msra.mxu0 0.0
        %568 = vmatprep.subr.mxu0 0.0
        %569 = vmatpush2.xpose.msra.mxu0 0.0
        %570 = vmatprep.subr.mxu0 0.0
        %571 = vmatpush2.xpose.msra.mxu0 0.0
        %572 = vmatprep.subr.mxu0 0.0
        %573 = vmatpush2.xpose.msra.mxu0 0.0
        %574 = vmatprep.subr.mxu0 0.0
        %575 = vmatpush2.xpose.msra.mxu0 0.0
        %576 = vmatprep.subr.mxu0 0.0
        %577 = vmatpush2.xpose.msra.mxu0 0.0
        %578 = vmatprep.mubr.f32.mxu0 0.0
        %579 = vmatmul.mubr.f32.gmra.mxu0 %v464
        %v580 = vpop.f32.mrf.mxu0
        %v581 = vadd.f32 0.0, %v580
        %v582 = vpop.f32.mrf.mxu0
        %583 = vdwg.mxu0
        %s584 = sld [smem:[#allocation2]]
        %v585 = vstv %s584
        %v586 = vadd.f32 %v581, %v585
        %v587 = vxor.u32 %v586, 2147483648
        %v588 = vmul.f32 %v587, 1.442695
        %v589 = vpow.pop %v588
        %v590 = vadd.f32 %v589, 1.0
        %v591 = vrcp.pop %v590
        %v592 = vmul.f32 1.0, %v591
        %593 = vst [vmem:[%s218] sm:$0x1] %v592
        %s594 = sand.u32 %s138, 1
        %s595 = scalar_lea.sflag [#allocation4], %s594
        %s596 = sand.u32 %s138, 1
        %s597 = scalar_lea.vmem [#allocation3], %s596
        // Predicated region
        $region41: #{tpu_custom_call.1} parent=39 // pred_check
          %p598 = pneg %p148
        $region42: #{tpu_custom_call.1} parent=39 // pred_check_branch
          %600 = sbr.rel (%p598) target = $region44
        $region43: #{tpu_custom_call.1} parent=39 // pred_region
          %s602 = ssub.s32 16, 16
          %603 = vsyncadd %s595, %s602
          %s604 = smul.addr %s20, 16
          %s605 = scalar_lea.hbm %s5, %s604
          %s607 = sshll.u32 %s597, 4
          %s608 = int_to_ptr.vmem [resolvable:$true] %s607
          %610 = dma.vmem_to_hbm [thread:$0]  %s608, 16, %s605, %s595
        $region44: #{tpu_custom_call.1} parent=39 // pred_fallthru
          _
      $region40: #{tpu_custom_call.1} parent=5 // pred_fallthru
        _
      %p611 = scmp.le.s32.totalorder 2, %s15
      // Predicated region
      $region45: #{tpu_custom_call.1} parent=5 // pred_check
        %p612 = pneg %p611
      $region46: #{tpu_custom_call.1} parent=5 // pred_check_branch
        %614 = sbr.rel (%p612) target = $region48
      $region47: #{tpu_custom_call.1} parent=5 // pred_region
        %s615 = ssub.s32 %s15, 2
        // Predicated region
        $region49: #{tpu_custom_call.1} parent=47 // pred_check
          %p616 = pneg %p154
        $region50: #{tpu_custom_call.1} parent=47 // pred_check_branch
          %618 = sbr.rel (%p616) target = $region52
        $region51: #{tpu_custom_call.1} parent=47 // pred_region
          %s619 = sand.u32 %s139, 1
          %s620 = scalar_lea.sflag [#allocation4], %s619
          %s621 = sand.u32 %s139, 1
          %s622 = scalar_lea.vmem [#allocation3], %s621
          %623 = dma.done %s620, 16
        $region52: #{tpu_custom_call.1} parent=47 // pred_fallthru
          _
      $region48: #{tpu_custom_call.1} parent=5 // pred_fallthru
        _
    $region6: #{tpu_custom_call.1} parent=1 // loop_footer
      %s19 = sadd.s32 1, %s15
    $region7: #{tpu_custom_call.1} parent=1 // loop_footer_branch
      %14 = sbr.rel target = $region3
    $region8: #{tpu_custom_call.1} parent=1 // loop_exit
      _
    %624 = vsyncpa [#allocation4], 1
    %s625 = scalar_lea.sflag [#allocation4], 1
    %626 = vsyncpa %s625, 1

</llo_original>
